<compile_context>
chip_gen: v7x
topology: tpu7x:2x2x1
jax: 0.10.0
libtpu: 0.0.40
codegen_flags: <defaults>
</compile_context>

<pallas_src>
import functools

import jax
import jax.numpy as jnp
from jax.experimental import pallas as pl
from jax.experimental.pallas import tpu as pltpu

DIM_IN = 2048
DIM_OUT = 256
DROP_P = 0.5


def _round_up(n: int, m: int) -> int:
    return ((n + m - 1) // m) * m


def _bottleneck_kernel(x_ref, w_ref, b_ref, *rest, training: bool):
    """Fused Linear + ReLU + Dropout tile.

    x_ref : VMEM (tm, 2048) f32 input tile (streamed per grid step)
    w_ref : VMEM (2048, 256) f32 transposed weight (VMEM-resident)
    b_ref : VMEM (1, 256)    f32 bias              (VMEM-resident)
    u_ref : VMEM (tm, 256)   f32 dropout uniforms  (training only)
    o_ref : VMEM (tm, 256)   output tile
    """
    if training:
        u_ref, o_ref = rest
    else:
        (o_ref,) = rest

    # bf16 operands on the MXU, f32 accumulation.  Casts happen in VMEM.
    x = x_ref[...].astype(jnp.bfloat16)
    w = w_ref[...].astype(jnp.bfloat16)
    y = jnp.dot(x, w, preferred_element_type=jnp.float32)
    y = y + b_ref[...]                    # bias, broadcast over rows
    y = jnp.maximum(y, 0.0)               # ReLU
    if training:
        keep = u_ref[...] >= DROP_P       # inverted dropout, p = 0.5
        y = jnp.where(keep, y * (1.0 / (1.0 - DROP_P)), 0.0)
    o_ref[...] = y.astype(o_ref.dtype)


def res_middle_office(x, w_t, b, *, key=None, training=False, tm=512):
    """x: [B, 2048] f32, w_t: [2048, 256] f32, b: [1, 256] f32 -> [B, 256] f32."""
    B, K = x.shape
    assert K == DIM_IN and w_t.shape == (DIM_IN, DIM_OUT) and b.shape == (1, DIM_OUT)

    # Batch tile: multiple of 8 (sublane), capped at `tm`.
    tm_eff = min(tm, _round_up(B, 8))
    Bp = _round_up(B, tm_eff)

    xin = x
    if Bp != B:
        xin = jnp.pad(xin, ((0, Bp - B), (0, 0)))

    grid = (Bp // tm_eff,)
    in_specs = [
        pl.BlockSpec((tm_eff, DIM_IN), lambda i: (i, 0)),
        pl.BlockSpec((DIM_IN, DIM_OUT), lambda i: (0, 0)),
        pl.BlockSpec((1, DIM_OUT), lambda i: (0, 0)),
    ]
    inputs = [xin, w_t, b]

    if training:
        assert key is not None, "training=True requires a PRNG key"
        u = jax.random.uniform(key, (Bp, DIM_OUT), dtype=jnp.float32)
        in_specs.append(pl.BlockSpec((tm_eff, DIM_OUT), lambda i: (i, 0)))
        inputs.append(u)

    kernel = functools.partial(_bottleneck_kernel, training=training)

    out = pl.pallas_call(
        kernel,
        out_shape=jax.ShapeDtypeStruct((Bp, DIM_OUT), x.dtype),
        grid=grid,
        in_specs=in_specs,
        out_specs=pl.BlockSpec((tm_eff, DIM_OUT), lambda i: (i, 0)),
        compiler_params=pltpu.CompilerParams(
            dimension_semantics=("parallel",),
        ),
    )(*inputs)

    return out[:B]


def _init_params(key):
    """Deterministic synthetic init matching nn.Linear(2048, 256) shapes."""
    kw, kb = jax.random.split(key)
    bound = 1.0 / (DIM_IN ** 0.5)          # PyTorch Linear default init bound
    w = jax.random.uniform(kw, (DIM_OUT, DIM_IN), jnp.float32, -bound, bound)
    b = jax.random.uniform(kb, (DIM_OUT,), jnp.float32, -bound, bound)
    return w, b


if __name__ == "__main__":
    key = jax.random.PRNGKey(0)
    kx, kp, kd = jax.random.split(key, 3)

    B = 8                                   # small batch
    x = jax.random.normal(kx, (B, DIM_IN), dtype=jnp.float32)
    w, b = _init_params(kp)
    w_t = w.T                               # [2048, 256]
    b2 = b.reshape(1, DIM_OUT)

    # --- eval mode (Dropout is identity) ---
    y_eval = res_middle_office(x, w_t, b2, training=False)
    y_eval = jax.block_until_ready(y_eval)

    # Reference computed with the same bf16 operand cast / f32 accumulation.
    y_lin_ref = jnp.dot(
        x.astype(jnp.bfloat16), w_t.astype(jnp.bfloat16),
        preferred_element_type=jnp.float32,
    ) + b2
    y_ref_eval = jnp.maximum(y_lin_ref, 0.0)
    assert y_eval.shape == (B, DIM_OUT)
    assert jnp.allclose(y_eval, y_ref_eval, atol=1e-2, rtol=1e-2), \
        "eval-mode mismatch vs reference"

    # --- training mode (Dropout active, deterministic given kd) ---
    y_train = res_middle_office(x, w_t, b2, key=kd, training=True)
    y_train = jax.block_until_ready(y_train)
    u_ref = jax.random.uniform(kd, (B, DIM_OUT), dtype=jnp.float32)
    y_ref_train = jnp.where(u_ref >= DROP_P, y_ref_eval * 2.0, 0.0)
    assert y_train.shape == (B, DIM_OUT)
    assert jnp.allclose(y_train, y_ref_train, atol=1e-2, rtol=1e-2), \
        "training-mode mismatch vs reference"

    print("KERNEL_OK")
</pallas_src>

<mosaic_0001>
module attributes {stable_mosaic.version = 11 : i64} {
  func.func @_bottleneck_kernel(%arg0: i32, %arg1: memref<8x2048xf32, #tpu.memory_space<vmem>>, %arg2: memref<2048x256xf32, #tpu.memory_space<vmem>>, %arg3: memref<1x256xf32, #tpu.memory_space<vmem>>, %arg4: memref<8x256xf32, #tpu.memory_space<vmem>>) attributes {dimension_semantics = [#tpu.dimension_semantics<parallel>], iteration_bounds = array<i64: 1>, scalar_prefetch = 0 : i64, scratch_operands = 0 : i64, tpu.core_type = #tpu.core_type<tc>, window_params = [{transform_indices = @transform_0, window_bounds = array<i64: 8, 2048>}, {pipeline_mode = #tpu.pipeline_mode<synchronous>, transform_indices = @transform_1, window_bounds = array<i64: 2048, 256>}, {pipeline_mode = #tpu.pipeline_mode<synchronous>, transform_indices = @transform_2, window_bounds = array<i64: 1, 256>}, {transform_indices = @transform_3, window_bounds = array<i64: 8, 256>}]} {
    %c0 = arith.constant 0 : index
    %c0_0 = arith.constant 0 : index
    %0 = vector.load %arg1[%c0, %c0_0] : memref<8x2048xf32, #tpu.memory_space<vmem>>, vector<8x2048xf32>
    %1 = arith.truncf %0 : vector<8x2048xf32> to vector<8x2048xbf16>
    %c0_1 = arith.constant 0 : index
    %c0_2 = arith.constant 0 : index
    %2 = vector.load %arg2[%c0_1, %c0_2] : memref<2048x256xf32, #tpu.memory_space<vmem>>, vector<2048x256xf32>
    %3 = arith.truncf %2 : vector<2048x256xf32> to vector<2048x256xbf16>
    %cst = arith.constant dense<0.000000e+00> : vector<8x256xf32>
    %4 = tpu.matmul %1, %3, %cst {dimension_numbers = #tpu.dot_dimension_numbers<[1], [0], [0], [1], [0, 0, 1, 1], [], []>} : vector<8x2048xbf16>, vector<2048x256xbf16>, vector<8x256xf32> -> vector<8x256xf32>
    %c0_3 = arith.constant 0 : index
    %c0_4 = arith.constant 0 : index
    %5 = vector.load %arg3[%c0_3, %c0_4] : memref<1x256xf32, #tpu.memory_space<vmem>>, vector<1x256xf32>
    %6 = vector.broadcast %5 : vector<1x256xf32> to vector<8x256xf32>
    %7 = arith.addf %4, %6 : vector<8x256xf32>
    %cst_5 = arith.constant 0.000000e+00 : f32
    %8 = vector.broadcast %cst_5 : f32 to vector<8x256xf32>
    %9 = arith.maximumf %7, %8 : vector<8x256xf32>
    %c0_6 = arith.constant 0 : index
    %c0_7 = arith.constant 0 : index
    %10 = vector.load %arg4[%c0_6, %c0_7] : memref<8x256xf32, #tpu.memory_space<vmem>>, vector<8x256xf32>
    tpu.vector_store %arg4[%c0_6, %c0_7], %9 {strides = array<i32>} : memref<8x256xf32, #tpu.memory_space<vmem>>, vector<8x256xf32>,
    return
  }
  func.func @transform_0(%arg0: i32) -> (i32, i32) {
    %c0_i32 = arith.constant 0 : i32
    %c0_i32_0 = arith.constant 0 : i32
    return %arg0, %c0_i32 : i32, i32
  }
  func.func @transform_1(%arg0: i32) -> (i32, i32) {
    %c0_i32 = arith.constant 0 : i32
    %c0_i32_0 = arith.constant 0 : i32
    %c0_i32_1 = arith.constant 0 : i32
    return %c0_i32, %c0_i32_0 : i32, i32
  }
  func.func @transform_2(%arg0: i32) -> (i32, i32) {
    %c0_i32 = arith.constant 0 : i32
    %c0_i32_0 = arith.constant 0 : i32
    %c0_i32_1 = arith.constant 0 : i32
    return %c0_i32, %c0_i32_0 : i32, i32
  }
  func.func @transform_3(%arg0: i32) -> (i32, i32) {
    %c0_i32 = arith.constant 0 : i32
    %c0_i32_0 = arith.constant 0 : i32
    return %arg0, %c0_i32 : i32, i32
  }
}

</mosaic_0001>

<llo_original>
// kernel: tpu_custom_call.1
$region0: #{tpu_custom_call.1}
  #allocation0 [shape = 'u32[]', space=smem, size = 0x4, offset = 0x4, fixed_abs, tag = 'smem constant byte address 0x4 - core index']
  #allocation1 [shape = 'u32[144,128]{1,0:T(1,128)}', space=vmem, size = 0x12000, scoped, tag = 'internal scratch']
  %s0 = inlined_call_operand.hbm [shape: f32[8,2048], index: 0, kind: input, shape index: {}]
  %s1 = inlined_call_operand.hbm [shape: f32[2048,256], index: 1, kind: input, shape index: {}]
  %s2 = inlined_call_operand.hbm [shape: f32[1,256], index: 2, kind: input, shape index: {}]
  %s3 = inlined_call_operand.hbm [shape: f32[8,256], index: 3, kind: output, shape index: {}]
  %s4 = sld [smem:[#allocation0]]
  $region34: #{tpu_custom_call.1} parent=0
    _
  %s6 = ssub.s32 1, %s4
  %s7 = scalar_select 0, %s6, %s4
  $region1: #{tpu_custom_call.1} parent=0
    #allocation2 [shape = 'u8[65536]{0}', space=vmem, size = 0x10000, scoped, tag = 'input window, operand 0, single buffered']
    #allocation3 [shape = 's32[1]{0}', space=sflag, size = 0x4, scoped, tag = 'scoped memory for tpu_custom_call.1']
    #allocation4 [shape = 's32[1]{0}', space=sflag, size = 0x4, scoped, tag = 'scoped memory for tpu_custom_call.1']
    #allocation5 [shape = 'u8[2097152]{0}', space=vmem, size = 0x200000, scoped, tag = 'input window, operand 1, single buffered']
    #allocation6 [shape = 's32[1]{0}', space=sflag, size = 0x4, scoped, tag = 'scoped memory for tpu_custom_call.1']
    #allocation7 [shape = 'u8[1024]{0}', space=vmem, size = 0x400, scoped, tag = 'input window, operand 2, single buffered']
    #allocation8 [shape = 'u8[8192]{0}', space=vmem, size = 0x2000, scoped, tag = 'output window, operand 0, single buffered']
    %8 = vsyncpa [#allocation3], 0
    %9 = vsyncpa [#allocation6], 0
    %10 = vsyncpa [#allocation4], 0
    // Predicated region
    $region2: #{tpu_custom_call.1} parent=1 // pred_check
      _
    $region3: #{tpu_custom_call.1} parent=1 // pred_check_branch
      %12 = sbr.rel (0) target = $region5
    $region4: #{tpu_custom_call.1} parent=1 // pred_region
      %s14 = ssub.s32 2048, 2048
      %15 = vsyncadd [#allocation3], %s14
      %s17 = sshll.u32 [#allocation2], 4
      %s18 = int_to_ptr.vmem [resolvable:$true] %s17
      %20 = dma.hbm_to_vmem [thread:$0]  %s0, 2048, %s18, [#allocation3]
    $region5: #{tpu_custom_call.1} parent=1 // pred_fallthru
      _
    // Predicated region
    $region6: #{tpu_custom_call.1} parent=1 // pred_check
      _
    $region7: #{tpu_custom_call.1} parent=1 // pred_check_branch
      %22 = sbr.rel (0) target = $region9
    $region8: #{tpu_custom_call.1} parent=1 // pred_region
      %s24 = ssub.s32 65536, 65536
      %25 = vsyncadd [#allocation6], %s24
      %s26 = sshll.u32 [#allocation5], 4
      %s27 = int_to_ptr.vmem [resolvable:$true] %s26
      %32 = dma.hbm_to_vmem [thread:$0]  %s1, 65536, %s27, [#allocation6], 256, 256, 16
    $region9: #{tpu_custom_call.1} parent=1 // pred_fallthru
      _
    // Predicated region
    $region10: #{tpu_custom_call.1} parent=1 // pred_check
      _
    $region11: #{tpu_custom_call.1} parent=1 // pred_check_branch
      %34 = sbr.rel (0) target = $region13
    $region12: #{tpu_custom_call.1} parent=1 // pred_region
      %s36 = ssub.s32 32, 32
      %37 = vsyncadd [#allocation6], %s36
      %s39 = sshll.u32 [#allocation7], 4
      %s40 = int_to_ptr.vmem [resolvable:$true] %s39
      %42 = dma.hbm_to_vmem [thread:$0]  %s2, 32, %s40, [#allocation6]
    $region13: #{tpu_custom_call.1} parent=1 // pred_fallthru
      _
    // Predicated region
    $region14: #{tpu_custom_call.1} parent=1 // pred_check
      _
    $region15: #{tpu_custom_call.1} parent=1 // pred_check_branch
      %44 = sbr.rel (0) target = $region17
    $region16: #{tpu_custom_call.1} parent=1 // pred_region
      %45 = dma.done [#allocation3], 2048
    $region17: #{tpu_custom_call.1} parent=1 // pred_fallthru
      _
    // Predicated region
    $region18: #{tpu_custom_call.1} parent=1 // pred_check
      _
    $region19: #{tpu_custom_call.1} parent=1 // pred_check_branch
      %47 = sbr.rel (0) target = $region21
    $region20: #{tpu_custom_call.1} parent=1 // pred_region
      %48 = dma.done [#allocation6], 65536
    $region21: #{tpu_custom_call.1} parent=1 // pred_fallthru
      _
    // Predicated region
    $region22: #{tpu_custom_call.1} parent=1 // pred_check
      _
    $region23: #{tpu_custom_call.1} parent=1 // pred_check_branch
      %50 = sbr.rel (0) target = $region25
    $region24: #{tpu_custom_call.1} parent=1 // pred_region
      %51 = dma.done [#allocation6], 32
    $region25: #{tpu_custom_call.1} parent=1 // pred_fallthru
      _
    %v52 = vld [vmem:[#allocation2] sm:$0xff]
    %v53 = vld [vmem:[#allocation2 + $0x8] sm:$0xff]
    %v54 = vld [vmem:[#allocation2 + $0x10] sm:$0xff]
    %v55 = vld [vmem:[#allocation2 + $0x18] sm:$0xff]
    %v56 = vld [vmem:[#allocation2 + $0x20] sm:$0xff]
    %v57 = vld [vmem:[#allocation2 + $0x28] sm:$0xff]
    %v58 = vld [vmem:[#allocation2 + $0x30] sm:$0xff]
    %v59 = vld [vmem:[#allocation2 + $0x38] sm:$0xff]
    %v60 = vld [vmem:[#allocation2 + $0x40] sm:$0xff]
    %v61 = vld [vmem:[#allocation2 + $0x48] sm:$0xff]
    %v62 = vld [vmem:[#allocation2 + $0x50] sm:$0xff]
    %v63 = vld [vmem:[#allocation2 + $0x58] sm:$0xff]
    %v64 = vld [vmem:[#allocation2 + $0x60] sm:$0xff]
    %v65 = vld [vmem:[#allocation2 + $0x68] sm:$0xff]
    %v66 = vld [vmem:[#allocation2 + $0x70] sm:$0xff]
    %v67 = vld [vmem:[#allocation2 + $0x78] sm:$0xff]
    %v68 = vpack.c.bf16 %v52, %v52
    %v69 = vpack.c.bf16 %v53, %v53
    %v70 = vpack.c.bf16 %v54, %v54
    %v71 = vpack.c.bf16 %v55, %v55
    %v72 = vpack.c.bf16 %v56, %v56
    %v73 = vpack.c.bf16 %v57, %v57
    %v74 = vpack.c.bf16 %v58, %v58
    %v75 = vpack.c.bf16 %v59, %v59
    %v76 = vpack.c.bf16 %v60, %v60
    %v77 = vpack.c.bf16 %v61, %v61
    %v78 = vpack.c.bf16 %v62, %v62
    %v79 = vpack.c.bf16 %v63, %v63
    %v80 = vpack.c.bf16 %v64, %v64
    %v81 = vpack.c.bf16 %v65, %v65
    %v82 = vpack.c.bf16 %v66, %v66
    %v83 = vpack.c.bf16 %v67, %v67
    %v84 = vld [vmem:[#allocation5] sm:$0xff]
    %v85 = vld [vmem:[#allocation5 + $0x8] sm:$0xff]
    %v86 = vld [vmem:[#allocation5 + $0x10] sm:$0xff]
    %v87 = vld [vmem:[#allocation5 + $0x18] sm:$0xff]
    %v88 = vld [vmem:[#allocation5 + $0x20] sm:$0xff]
    %v89 = vld [vmem:[#allocation5 + $0x28] sm:$0xff]
    %v90 = vld [vmem:[#allocation5 + $0x30] sm:$0xff]
    %v91 = vld [vmem:[#allocation5 + $0x38] sm:$0xff]
    %v92 = vld [vmem:[#allocation5 + $0x40] sm:$0xff]
    %v93 = vld [vmem:[#allocation5 + $0x48] sm:$0xff]
    %v94 = vld [vmem:[#allocation5 + $0x50] sm:$0xff]
    %v95 = vld [vmem:[#allocation5 + $0x58] sm:$0xff]
    %v96 = vld [vmem:[#allocation5 + $0x60] sm:$0xff]
    %v97 = vld [vmem:[#allocation5 + $0x68] sm:$0xff]
    %v98 = vld [vmem:[#allocation5 + $0x70] sm:$0xff]
    %v99 = vld [vmem:[#allocation5 + $0x78] sm:$0xff]
    %v100 = vld [vmem:[#allocation5 + $0x80] sm:$0xff]
    %v101 = vld [vmem:[#allocation5 + $0x88] sm:$0xff]
    %v102 = vld [vmem:[#allocation5 + $0x90] sm:$0xff]
    %v103 = vld [vmem:[#allocation5 + $0x98] sm:$0xff]
    %v104 = vld [vmem:[#allocation5 + $0xa0] sm:$0xff]
    %v105 = vld [vmem:[#allocation5 + $0xa8] sm:$0xff]
    %v106 = vld [vmem:[#allocation5 + $0xb0] sm:$0xff]
    %v107 = vld [vmem:[#allocation5 + $0xb8] sm:$0xff]
    %v108 = vld [vmem:[#allocation5 + $0xc0] sm:$0xff]
    %v109 = vld [vmem:[#allocation5 + $0xc8] sm:$0xff]
    %v110 = vld [vmem:[#allocation5 + $0xd0] sm:$0xff]
    %v111 = vld [vmem:[#allocation5 + $0xd8] sm:$0xff]
    %v112 = vld [vmem:[#allocation5 + $0xe0] sm:$0xff]
    %v113 = vld [vmem:[#allocation5 + $0xe8] sm:$0xff]
    %v114 = vld [vmem:[#allocation5 + $0xf0] sm:$0xff]
    %v115 = vld [vmem:[#allocation5 + $0xf8] sm:$0xff]
    %v116 = vld [vmem:[#allocation5 + $0x100] sm:$0xff]
    %v117 = vld [vmem:[#allocation5 + $0x108] sm:$0xff]
    %v118 = vld [vmem:[#allocation5 + $0x110] sm:$0xff]
    %v119 = vld [vmem:[#allocation5 + $0x118] sm:$0xff]
    %v120 = vld [vmem:[#allocation5 + $0x120] sm:$0xff]
    %v121 = vld [vmem:[#allocation5 + $0x128] sm:$0xff]
    %v122 = vld [vmem:[#allocation5 + $0x130] sm:$0xff]
    %v123 = vld [vmem:[#allocation5 + $0x138] sm:$0xff]
    %v124 = vld [vmem:[#allocation5 + $0x140] sm:$0xff]
    %v125 = vld [vmem:[#allocation5 + $0x148] sm:$0xff]
    %v126 = vld [vmem:[#allocation5 + $0x150] sm:$0xff]
    %v127 = vld [vmem:[#allocation5 + $0x158] sm:$0xff]
    %v128 = vld [vmem:[#allocation5 + $0x160] sm:$0xff]
    %v129 = vld [vmem:[#allocation5 + $0x168] sm:$0xff]
    %v130 = vld [vmem:[#allocation5 + $0x170] sm:$0xff]
    %v131 = vld [vmem:[#allocation5 + $0x178] sm:$0xff]
    %v132 = vld [vmem:[#allocation5 + $0x180] sm:$0xff]
    %v133 = vld [vmem:[#allocation5 + $0x188] sm:$0xff]
    %v134 = vld [vmem:[#allocation5 + $0x190] sm:$0xff]
    %v135 = vld [vmem:[#allocation5 + $0x198] sm:$0xff]
    %v136 = vld [vmem:[#allocation5 + $0x1a0] sm:$0xff]
    %v137 = vld [vmem:[#allocation5 + $0x1a8] sm:$0xff]
    %v138 = vld [vmem:[#allocation5 + $0x1b0] sm:$0xff]
    %v139 = vld [vmem:[#allocation5 + $0x1b8] sm:$0xff]
    %v140 = vld [vmem:[#allocation5 + $0x1c0] sm:$0xff]
    %v141 = vld [vmem:[#allocation5 + $0x1c8] sm:$0xff]
    %v142 = vld [vmem:[#allocation5 + $0x1d0] sm:$0xff]
    %v143 = vld [vmem:[#allocation5 + $0x1d8] sm:$0xff]
    %v144 = vld [vmem:[#allocation5 + $0x1e0] sm:$0xff]
    %v145 = vld [vmem:[#allocation5 + $0x1e8] sm:$0xff]
    %v146 = vld [vmem:[#allocation5 + $0x1f0] sm:$0xff]
    %v147 = vld [vmem:[#allocation5 + $0x1f8] sm:$0xff]
    %v148 = vld [vmem:[#allocation5 + $0x200] sm:$0xff]
    %v149 = vld [vmem:[#allocation5 + $0x208] sm:$0xff]
    %v150 = vld [vmem:[#allocation5 + $0x210] sm:$0xff]
    %v151 = vld [vmem:[#allocation5 + $0x218] sm:$0xff]
    %v152 = vld [vmem:[#allocation5 + $0x220] sm:$0xff]
    %v153 = vld [vmem:[#allocation5 + $0x228] sm:$0xff]
    %v154 = vld [vmem:[#allocation5 + $0x230] sm:$0xff]
    %v155 = vld [vmem:[#allocation5 + $0x238] sm:$0xff]
    %v156 = vld [vmem:[#allocation5 + $0x240] sm:$0xff]
    %v157 = vld [vmem:[#allocation5 + $0x248] sm:$0xff]
    %v158 = vld [vmem:[#allocation5 + $0x250] sm:$0xff]
    %v159 = vld [vmem:[#allocation5 + $0x258] sm:$0xff]
    %v160 = vld [vmem:[#allocation5 + $0x260] sm:$0xff]
    %v161 = vld [vmem:[#allocation5 + $0x268] sm:$0xff]
    %v162 = vld [vmem:[#allocation5 + $0x270] sm:$0xff]
    %v163 = vld [vmem:[#allocation5 + $0x278] sm:$0xff]
    %v164 = vld [vmem:[#allocation5 + $0x280] sm:$0xff]
    %v165 = vld [vmem:[#allocation5 + $0x288] sm:$0xff]
    %v166 = vld [vmem:[#allocation5 + $0x290] sm:$0xff]
    %v167 = vld [vmem:[#allocation5 + $0x298] sm:$0xff]
    %v168 = vld [vmem:[#allocation5 + $0x2a0] sm:$0xff]
    %v169 = vld [vmem:[#allocation5 + $0x2a8] sm:$0xff]
    %v170 = vld [vmem:[#allocation5 + $0x2b0] sm:$0xff]
    %v171 = vld [vmem:[#allocation5 + $0x2b8] sm:$0xff]
    %v172 = vld [vmem:[#allocation5 + $0x2c0] sm:$0xff]
    %v173 = vld [vmem:[#allocation5 + $0x2c8] sm:$0xff]
    %v174 = vld [vmem:[#allocation5 + $0x2d0] sm:$0xff]
    %v175 = vld [vmem:[#allocation5 + $0x2d8] sm:$0xff]
    %v176 = vld [vmem:[#allocation5 + $0x2e0] sm:$0xff]
    %v177 = vld [vmem:[#allocation5 + $0x2e8] sm:$0xff]
    %v178 = vld [vmem:[#allocation5 + $0x2f0] sm:$0xff]
    %v179 = vld [vmem:[#allocation5 + $0x2f8] sm:$0xff]
    %v180 = vld [vmem:[#allocation5 + $0x300] sm:$0xff]
    %v181 = vld [vmem:[#allocation5 + $0x308] sm:$0xff]
    %v182 = vld [vmem:[#allocation5 + $0x310] sm:$0xff]
    %v183 = vld [vmem:[#allocation5 + $0x318] sm:$0xff]
    %v184 = vld [vmem:[#allocation5 + $0x320] sm:$0xff]
    %v185 = vld [vmem:[#allocation5 + $0x328] sm:$0xff]
    %v186 = vld [vmem:[#allocation5 + $0x330] sm:$0xff]
    %v187 = vld [vmem:[#allocation5 + $0x338] sm:$0xff]
    %v188 = vld [vmem:[#allocation5 + $0x340] sm:$0xff]
    %v189 = vld [vmem:[#allocation5 + $0x348] sm:$0xff]
    %v190 = vld [vmem:[#allocation5 + $0x350] sm:$0xff]
    %v191 = vld [vmem:[#allocation5 + $0x358] sm:$0xff]
    %v192 = vld [vmem:[#allocation5 + $0x360] sm:$0xff]
    %v193 = vld [vmem:[#allocation5 + $0x368] sm:$0xff]
    %v194 = vld [vmem:[#allocation5 + $0x370] sm:$0xff]
    %v195 = vld [vmem:[#allocation5 + $0x378] sm:$0xff]
    %v196 = vld [vmem:[#allocation5 + $0x380] sm:$0xff]
    %v197 = vld [vmem:[#allocation5 + $0x388] sm:$0xff]
    %v198 = vld [vmem:[#allocation5 + $0x390] sm:$0xff]
    %v199 = vld [vmem:[#allocation5 + $0x398] sm:$0xff]
    %v200 = vld [vmem:[#allocation5 + $0x3a0] sm:$0xff]
    %v201 = vld [vmem:[#allocation5 + $0x3a8] sm:$0xff]
    %v202 = vld [vmem:[#allocation5 + $0x3b0] sm:$0xff]
    %v203 = vld [vmem:[#allocation5 + $0x3b8] sm:$0xff]
    %v204 = vld [vmem:[#allocation5 + $0x3c0] sm:$0xff]
    %v205 = vld [vmem:[#allocation5 + $0x3c8] sm:$0xff]
    %v206 = vld [vmem:[#allocation5 + $0x3d0] sm:$0xff]
    %v207 = vld [vmem:[#allocation5 + $0x3d8] sm:$0xff]
    %v208 = vld [vmem:[#allocation5 + $0x3e0] sm:$0xff]
    %v209 = vld [vmem:[#allocation5 + $0x3e8] sm:$0xff]
    %v210 = vld [vmem:[#allocation5 + $0x3f0] sm:$0xff]
    %v211 = vld [vmem:[#allocation5 + $0x3f8] sm:$0xff]
    %v212 = vld [vmem:[#allocation5 + $0x400] sm:$0xff]
    %v213 = vld [vmem:[#allocation5 + $0x408] sm:$0xff]
    %v214 = vld [vmem:[#allocation5 + $0x410] sm:$0xff]
    %v215 = vld [vmem:[#allocation5 + $0x418] sm:$0xff]
    %v216 = vld [vmem:[#allocation5 + $0x420] sm:$0xff]
    %v217 = vld [vmem:[#allocation5 + $0x428] sm:$0xff]
    %v218 = vld [vmem:[#allocation5 + $0x430] sm:$0xff]
    %v219 = vld [vmem:[#allocation5 + $0x438] sm:$0xff]
    %v220 = vld [vmem:[#allocation5 + $0x440] sm:$0xff]
    %v221 = vld [vmem:[#allocation5 + $0x448] sm:$0xff]
    %v222 = vld [vmem:[#allocation5 + $0x450] sm:$0xff]
    %v223 = vld [vmem:[#allocation5 + $0x458] sm:$0xff]
    %v224 = vld [vmem:[#allocation5 + $0x460] sm:$0xff]
    %v225 = vld [vmem:[#allocation5 + $0x468] sm:$0xff]
    %v226 = vld [vmem:[#allocation5 + $0x470] sm:$0xff]
    %v227 = vld [vmem:[#allocation5 + $0x478] sm:$0xff]
    %v228 = vld [vmem:[#allocation5 + $0x480] sm:$0xff]
    %v229 = vld [vmem:[#allocation5 + $0x488] sm:$0xff]
    %v230 = vld [vmem:[#allocation5 + $0x490] sm:$0xff]
    %v231 = vld [vmem:[#allocation5 + $0x498] sm:$0xff]
    %v232 = vld [vmem:[#allocation5 + $0x4a0] sm:$0xff]
    %v233 = vld [vmem:[#allocation5 + $0x4a8] sm:$0xff]
    %v234 = vld [vmem:[#allocation5 + $0x4b0] sm:$0xff]
    %v235 = vld [vmem:[#allocation5 + $0x4b8] sm:$0xff]
    %v236 = vld [vmem:[#allocation5 + $0x4c0] sm:$0xff]
    %v237 = vld [vmem:[#allocation5 + $0x4c8] sm:$0xff]
    %v238 = vld [vmem:[#allocation5 + $0x4d0] sm:$0xff]
    %v239 = vld [vmem:[#allocation5 + $0x4d8] sm:$0xff]
    %v240 = vld [vmem:[#allocation5 + $0x4e0] sm:$0xff]
    %v241 = vld [vmem:[#allocation5 + $0x4e8] sm:$0xff]
    %v242 = vld [vmem:[#allocation5 + $0x4f0] sm:$0xff]
    %v243 = vld [vmem:[#allocation5 + $0x4f8] sm:$0xff]
    %v244 = vld [vmem:[#allocation5 + $0x500] sm:$0xff]
    %v245 = vld [vmem:[#allocation5 + $0x508] sm:$0xff]
    %v246 = vld [vmem:[#allocation5 + $0x510] sm:$0xff]
    %v247 = vld [vmem:[#allocation5 + $0x518] sm:$0xff]
    %v248 = vld [vmem:[#allocation5 + $0x520] sm:$0xff]
    %v249 = vld [vmem:[#allocation5 + $0x528] sm:$0xff]
    %v250 = vld [vmem:[#allocation5 + $0x530] sm:$0xff]
    %v251 = vld [vmem:[#allocation5 + $0x538] sm:$0xff]
    %v252 = vld [vmem:[#allocation5 + $0x540] sm:$0xff]
    %v253 = vld [vmem:[#allocation5 + $0x548] sm:$0xff]
    %v254 = vld [vmem:[#allocation5 + $0x550] sm:$0xff]
    %v255 = vld [vmem:[#allocation5 + $0x558] sm:$0xff]
    %v256 = vld [vmem:[#allocation5 + $0x560] sm:$0xff]
    %v257 = vld [vmem:[#allocation5 + $0x568] sm:$0xff]
    %v258 = vld [vmem:[#allocation5 + $0x570] sm:$0xff]
    %v259 = vld [vmem:[#allocation5 + $0x578] sm:$0xff]
    %v260 = vld [vmem:[#allocation5 + $0x580] sm:$0xff]
    %v261 = vld [vmem:[#allocation5 + $0x588] sm:$0xff]
    %v262 = vld [vmem:[#allocation5 + $0x590] sm:$0xff]
    %v263 = vld [vmem:[#allocation5 + $0x598] sm:$0xff]
    %v264 = vld [vmem:[#allocation5 + $0x5a0] sm:$0xff]
    %v265 = vld [vmem:[#allocation5 + $0x5a8] sm:$0xff]
    %v266 = vld [vmem:[#allocation5 + $0x5b0] sm:$0xff]
    %v267 = vld [vmem:[#allocation5 + $0x5b8] sm:$0xff]
    %v268 = vld [vmem:[#allocation5 + $0x5c0] sm:$0xff]
    %v269 = vld [vmem:[#allocation5 + $0x5c8] sm:$0xff]
    %v270 = vld [vmem:[#allocation5 + $0x5d0] sm:$0xff]
    %v271 = vld [vmem:[#allocation5 + $0x5d8] sm:$0xff]
    %v272 = vld [vmem:[#allocation5 + $0x5e0] sm:$0xff]
    %v273 = vld [vmem:[#allocation5 + $0x5e8] sm:$0xff]
    %v274 = vld [vmem:[#allocation5 + $0x5f0] sm:$0xff]
    %v275 = vld [vmem:[#allocation5 + $0x5f8] sm:$0xff]
    %v276 = vld [vmem:[#allocation5 + $0x600] sm:$0xff]
    %v277 = vld [vmem:[#allocation5 + $0x608] sm:$0xff]
    %v278 = vld [vmem:[#allocation5 + $0x610] sm:$0xff]
    %v279 = vld [vmem:[#allocation5 + $0x618] sm:$0xff]
    %v280 = vld [vmem:[#allocation5 + $0x620] sm:$0xff]
    %v281 = vld [vmem:[#allocation5 + $0x628] sm:$0xff]
    %v282 = vld [vmem:[#allocation5 + $0x630] sm:$0xff]
    %v283 = vld [vmem:[#allocation5 + $0x638] sm:$0xff]
    %v284 = vld [vmem:[#allocation5 + $0x640] sm:$0xff]
    %v285 = vld [vmem:[#allocation5 + $0x648] sm:$0xff]
    %v286 = vld [vmem:[#allocation5 + $0x650] sm:$0xff]
    %v287 = vld [vmem:[#allocation5 + $0x658] sm:$0xff]
    %v288 = vld [vmem:[#allocation5 + $0x660] sm:$0xff]
    %v289 = vld [vmem:[#allocation5 + $0x668] sm:$0xff]
    %v290 = vld [vmem:[#allocation5 + $0x670] sm:$0xff]
    %v291 = vld [vmem:[#allocation5 + $0x678] sm:$0xff]
    %v292 = vld [vmem:[#allocation5 + $0x680] sm:$0xff]
    %v293 = vld [vmem:[#allocation5 + $0x688] sm:$0xff]
    %v294 = vld [vmem:[#allocation5 + $0x690] sm:$0xff]
    %v295 = vld [vmem:[#allocation5 + $0x698] sm:$0xff]
    %v296 = vld [vmem:[#allocation5 + $0x6a0] sm:$0xff]
    %v297 = vld [vmem:[#allocation5 + $0x6a8] sm:$0xff]
    %v298 = vld [vmem:[#allocation5 + $0x6b0] sm:$0xff]
    %v299 = vld [vmem:[#allocation5 + $0x6b8] sm:$0xff]
    %v300 = vld [vmem:[#allocation5 + $0x6c0] sm:$0xff]
    %v301 = vld [vmem:[#allocation5 + $0x6c8] sm:$0xff]
    %v302 = vld [vmem:[#allocation5 + $0x6d0] sm:$0xff]
    %v303 = vld [vmem:[#allocation5 + $0x6d8] sm:$0xff]
    %v304 = vld [vmem:[#allocation5 + $0x6e0] sm:$0xff]
    %v305 = vld [vmem:[#allocation5 + $0x6e8] sm:$0xff]
    %v306 = vld [vmem:[#allocation5 + $0x6f0] sm:$0xff]
    %v307 = vld [vmem:[#allocation5 + $0x6f8] sm:$0xff]
    %v308 = vld [vmem:[#allocation5 + $0x700] sm:$0xff]
    %v309 = vld [vmem:[#allocation5 + $0x708] sm:$0xff]
    %v310 = vld [vmem:[#allocation5 + $0x710] sm:$0xff]
    %v311 = vld [vmem:[#allocation5 + $0x718] sm:$0xff]
    %v312 = vld [vmem:[#allocation5 + $0x720] sm:$0xff]
    %v313 = vld [vmem:[#allocation5 + $0x728] sm:$0xff]
    %v314 = vld [vmem:[#allocation5 + $0x730] sm:$0xff]
    %v315 = vld [vmem:[#allocation5 + $0x738] sm:$0xff]
    %v316 = vld [vmem:[#allocation5 + $0x740] sm:$0xff]
    %v317 = vld [vmem:[#allocation5 + $0x748] sm:$0xff]
    %v318 = vld [vmem:[#allocation5 + $0x750] sm:$0xff]
    %v319 = vld [vmem:[#allocation5 + $0x758] sm:$0xff]
    %v320 = vld [vmem:[#allocation5 + $0x760] sm:$0xff]
    %v321 = vld [vmem:[#allocation5 + $0x768] sm:$0xff]
    %v322 = vld [vmem:[#allocation5 + $0x770] sm:$0xff]
    %v323 = vld [vmem:[#allocation5 + $0x778] sm:$0xff]
    %v324 = vld [vmem:[#allocation5 + $0x780] sm:$0xff]
    %v325 = vld [vmem:[#allocation5 + $0x788] sm:$0xff]
    %v326 = vld [vmem:[#allocation5 + $0x790] sm:$0xff]
    %v327 = vld [vmem:[#allocation5 + $0x798] sm:$0xff]
    %v328 = vld [vmem:[#allocation5 + $0x7a0] sm:$0xff]
    %v329 = vld [vmem:[#allocation5 + $0x7a8] sm:$0xff]
    %v330 = vld [vmem:[#allocation5 + $0x7b0] sm:$0xff]
    %v331 = vld [vmem:[#allocation5 + $0x7b8] sm:$0xff]
    %v332 = vld [vmem:[#allocation5 + $0x7c0] sm:$0xff]
    %v333 = vld [vmem:[#allocation5 + $0x7c8] sm:$0xff]
    %v334 = vld [vmem:[#allocation5 + $0x7d0] sm:$0xff]
    %v335 = vld [vmem:[#allocation5 + $0x7d8] sm:$0xff]
    %v336 = vld [vmem:[#allocation5 + $0x7e0] sm:$0xff]
    %v337 = vld [vmem:[#allocation5 + $0x7e8] sm:$0xff]
    %v338 = vld [vmem:[#allocation5 + $0x7f0] sm:$0xff]
    %v339 = vld [vmem:[#allocation5 + $0x7f8] sm:$0xff]
    %v340 = vld [vmem:[#allocation5 + $0x800] sm:$0xff]
    %v341 = vld [vmem:[#allocation5 + $0x808] sm:$0xff]
    %v342 = vld [vmem:[#allocation5 + $0x810] sm:$0xff]
    %v343 = vld [vmem:[#allocation5 + $0x818] sm:$0xff]
    %v344 = vld [vmem:[#allocation5 + $0x820] sm:$0xff]
    %v345 = vld [vmem:[#allocation5 + $0x828] sm:$0xff]
    %v346 = vld [vmem:[#allocation5 + $0x830] sm:$0xff]
    %v347 = vld [vmem:[#allocation5 + $0x838] sm:$0xff]
    %v348 = vld [vmem:[#allocation5 + $0x840] sm:$0xff]
    %v349 = vld [vmem:[#allocation5 + $0x848] sm:$0xff]
    %v350 = vld [vmem:[#allocation5 + $0x850] sm:$0xff]
    %v351 = vld [vmem:[#allocation5 + $0x858] sm:$0xff]
    %v352 = vld [vmem:[#allocation5 + $0x860] sm:$0xff]
    %v353 = vld [vmem:[#allocation5 + $0x868] sm:$0xff]
    %v354 = vld [vmem:[#allocation5 + $0x870] sm:$0xff]
    %v355 = vld [vmem:[#allocation5 + $0x878] sm:$0xff]
    %v356 = vld [vmem:[#allocation5 + $0x880] sm:$0xff]
    %v357 = vld [vmem:[#allocation5 + $0x888] sm:$0xff]
    %v358 = vld [vmem:[#allocation5 + $0x890] sm:$0xff]
    %v359 = vld [vmem:[#allocation5 + $0x898] sm:$0xff]
    %v360 = vld [vmem:[#allocation5 + $0x8a0] sm:$0xff]
    %v361 = vld [vmem:[#allocation5 + $0x8a8] sm:$0xff]
    %v362 = vld [vmem:[#allocation5 + $0x8b0] sm:$0xff]
    %v363 = vld [vmem:[#allocation5 + $0x8b8] sm:$0xff]
    %v364 = vld [vmem:[#allocation5 + $0x8c0] sm:$0xff]
    %v365 = vld [vmem:[#allocation5 + $0x8c8] sm:$0xff]
    %v366 = vld [vmem:[#allocation5 + $0x8d0] sm:$0xff]
    %v367 = vld [vmem:[#allocation5 + $0x8d8] sm:$0xff]
    %v368 = vld [vmem:[#allocation5 + $0x8e0] sm:$0xff]
    %v369 = vld [vmem:[#allocation5 + $0x8e8] sm:$0xff]
    %v370 = vld [vmem:[#allocation5 + $0x8f0] sm:$0xff]
    %v371 = vld [vmem:[#allocation5 + $0x8f8] sm:$0xff]
    %v372 = vld [vmem:[#allocation5 + $0x900] sm:$0xff]
    %v373 = vld [vmem:[#allocation5 + $0x908] sm:$0xff]
    %v374 = vld [vmem:[#allocation5 + $0x910] sm:$0xff]
    %v375 = vld [vmem:[#allocation5 + $0x918] sm:$0xff]
    %v376 = vld [vmem:[#allocation5 + $0x920] sm:$0xff]
    %v377 = vld [vmem:[#allocation5 + $0x928] sm:$0xff]
    %v378 = vld [vmem:[#allocation5 + $0x930] sm:$0xff]
    %v379 = vld [vmem:[#allocation5 + $0x938] sm:$0xff]
    %v380 = vld [vmem:[#allocation5 + $0x940] sm:$0xff]
    %v381 = vld [vmem:[#allocation5 + $0x948] sm:$0xff]
    %v382 = vld [vmem:[#allocation5 + $0x950] sm:$0xff]
    %v383 = vld [vmem:[#allocation5 + $0x958] sm:$0xff]
    %v384 = vld [vmem:[#allocation5 + $0x960] sm:$0xff]
    %v385 = vld [vmem:[#allocation5 + $0x968] sm:$0xff]
    %v386 = vld [vmem:[#allocation5 + $0x970] sm:$0xff]
    %v387 = vld [vmem:[#allocation5 + $0x978] sm:$0xff]
    %v388 = vld [vmem:[#allocation5 + $0x980] sm:$0xff]
    %v389 = vld [vmem:[#allocation5 + $0x988] sm:$0xff]
    %v390 = vld [vmem:[#allocation5 + $0x990] sm:$0xff]
    %v391 = vld [vmem:[#allocation5 + $0x998] sm:$0xff]
    %v392 = vld [vmem:[#allocation5 + $0x9a0] sm:$0xff]
    %v393 = vld [vmem:[#allocation5 + $0x9a8] sm:$0xff]
    %v394 = vld [vmem:[#allocation5 + $0x9b0] sm:$0xff]
    %v395 = vld [vmem:[#allocation5 + $0x9b8] sm:$0xff]
    %v396 = vld [vmem:[#allocation5 + $0x9c0] sm:$0xff]
    %v397 = vld [vmem:[#allocation5 + $0x9c8] sm:$0xff]
    %v398 = vld [vmem:[#allocation5 + $0x9d0] sm:$0xff]
    %v399 = vld [vmem:[#allocation5 + $0x9d8] sm:$0xff]
    %v400 = vld [vmem:[#allocation5 + $0x9e0] sm:$0xff]
    %v401 = vld [vmem:[#allocation5 + $0x9e8] sm:$0xff]
    %v402 = vld [vmem:[#allocation5 + $0x9f0] sm:$0xff]
    %v403 = vld [vmem:[#allocation5 + $0x9f8] sm:$0xff]
    %v404 = vld [vmem:[#allocation5 + $0xa00] sm:$0xff]
    %v405 = vld [vmem:[#allocation5 + $0xa08] sm:$0xff]
    %v406 = vld [vmem:[#allocation5 + $0xa10] sm:$0xff]
    %v407 = vld [vmem:[#allocation5 + $0xa18] sm:$0xff]
    %v408 = vld [vmem:[#allocation5 + $0xa20] sm:$0xff]
    %v409 = vld [vmem:[#allocation5 + $0xa28] sm:$0xff]
    %v410 = vld [vmem:[#allocation5 + $0xa30] sm:$0xff]
    %v411 = vld [vmem:[#allocation5 + $0xa38] sm:$0xff]
    %v412 = vld [vmem:[#allocation5 + $0xa40] sm:$0xff]
    %v413 = vld [vmem:[#allocation5 + $0xa48] sm:$0xff]
    %v414 = vld [vmem:[#allocation5 + $0xa50] sm:$0xff]
    %v415 = vld [vmem:[#allocation5 + $0xa58] sm:$0xff]
    %v416 = vld [vmem:[#allocation5 + $0xa60] sm:$0xff]
    %v417 = vld [vmem:[#allocation5 + $0xa68] sm:$0xff]
    %v418 = vld [vmem:[#allocation5 + $0xa70] sm:$0xff]
    %v419 = vld [vmem:[#allocation5 + $0xa78] sm:$0xff]
    %v420 = vld [vmem:[#allocation5 + $0xa80] sm:$0xff]
    %v421 = vld [vmem:[#allocation5 + $0xa88] sm:$0xff]
    %v422 = vld [vmem:[#allocation5 + $0xa90] sm:$0xff]
    %v423 = vld [vmem:[#allocation5 + $0xa98] sm:$0xff]
    %v424 = vld [vmem:[#allocation5 + $0xaa0] sm:$0xff]
    %v425 = vld [vmem:[#allocation5 + $0xaa8] sm:$0xff]
    %v426 = vld [vmem:[#allocation5 + $0xab0] sm:$0xff]
    %v427 = vld [vmem:[#allocation5 + $0xab8] sm:$0xff]
    %v428 = vld [vmem:[#allocation5 + $0xac0] sm:$0xff]
    %v429 = vld [vmem:[#allocation5 + $0xac8] sm:$0xff]
    %v430 = vld [vmem:[#allocation5 + $0xad0] sm:$0xff]
    %v431 = vld [vmem:[#allocation5 + $0xad8] sm:$0xff]
    %v432 = vld [vmem:[#allocation5 + $0xae0] sm:$0xff]
    %v433 = vld [vmem:[#allocation5 + $0xae8] sm:$0xff]
    %v434 = vld [vmem:[#allocation5 + $0xaf0] sm:$0xff]
    %v435 = vld [vmem:[#allocation5 + $0xaf8] sm:$0xff]
    %v436 = vld [vmem:[#allocation5 + $0xb00] sm:$0xff]
    %v437 = vld [vmem:[#allocation5 + $0xb08] sm:$0xff]
    %v438 = vld [vmem:[#allocation5 + $0xb10] sm:$0xff]
    %v439 = vld [vmem:[#allocation5 + $0xb18] sm:$0xff]
    %v440 = vld [vmem:[#allocation5 + $0xb20] sm:$0xff]
    %v441 = vld [vmem:[#allocation5 + $0xb28] sm:$0xff]
    %v442 = vld [vmem:[#allocation5 + $0xb30] sm:$0xff]
    %v443 = vld [vmem:[#allocation5 + $0xb38] sm:$0xff]
    %v444 = vld [vmem:[#allocation5 + $0xb40] sm:$0xff]
    %v445 = vld [vmem:[#allocation5 + $0xb48] sm:$0xff]
    %v446 = vld [vmem:[#allocation5 + $0xb50] sm:$0xff]
    %v447 = vld [vmem:[#allocation5 + $0xb58] sm:$0xff]
    %v448 = vld [vmem:[#allocation5 + $0xb60] sm:$0xff]
    %v449 = vld [vmem:[#allocation5 + $0xb68] sm:$0xff]
    %v450 = vld [vmem:[#allocation5 + $0xb70] sm:$0xff]
    %v451 = vld [vmem:[#allocation5 + $0xb78] sm:$0xff]
    %v452 = vld [vmem:[#allocation5 + $0xb80] sm:$0xff]
    %v453 = vld [vmem:[#allocation5 + $0xb88] sm:$0xff]
    %v454 = vld [vmem:[#allocation5 + $0xb90] sm:$0xff]
    %v455 = vld [vmem:[#allocation5 + $0xb98] sm:$0xff]
    %v456 = vld [vmem:[#allocation5 + $0xba0] sm:$0xff]
    %v457 = vld [vmem:[#allocation5 + $0xba8] sm:$0xff]
    %v458 = vld [vmem:[#allocation5 + $0xbb0] sm:$0xff]
    %v459 = vld [vmem:[#allocation5 + $0xbb8] sm:$0xff]
    %v460 = vld [vmem:[#allocation5 + $0xbc0] sm:$0xff]
    %v461 = vld [vmem:[#allocation5 + $0xbc8] sm:$0xff]
    %v462 = vld [vmem:[#allocation5 + $0xbd0] sm:$0xff]
    %v463 = vld [vmem:[#allocation5 + $0xbd8] sm:$0xff]
    %v464 = vld [vmem:[#allocation5 + $0xbe0] sm:$0xff]
    %v465 = vld [vmem:[#allocation5 + $0xbe8] sm:$0xff]
    %v466 = vld [vmem:[#allocation5 + $0xbf0] sm:$0xff]
    %v467 = vld [vmem:[#allocation5 + $0xbf8] sm:$0xff]
    %v468 = vld [vmem:[#allocation5 + $0xc00] sm:$0xff]
    %v469 = vld [vmem:[#allocation5 + $0xc08] sm:$0xff]
    %v470 = vld [vmem:[#allocation5 + $0xc10] sm:$0xff]
    %v471 = vld [vmem:[#allocation5 + $0xc18] sm:$0xff]
    %v472 = vld [vmem:[#allocation5 + $0xc20] sm:$0xff]
    %v473 = vld [vmem:[#allocation5 + $0xc28] sm:$0xff]
    %v474 = vld [vmem:[#allocation5 + $0xc30] sm:$0xff]
    %v475 = vld [vmem:[#allocation5 + $0xc38] sm:$0xff]
    %v476 = vld [vmem:[#allocation5 + $0xc40] sm:$0xff]
    %v477 = vld [vmem:[#allocation5 + $0xc48] sm:$0xff]
    %v478 = vld [vmem:[#allocation5 + $0xc50] sm:$0xff]
    %v479 = vld [vmem:[#allocation5 + $0xc58] sm:$0xff]
    %v480 = vld [vmem:[#allocation5 + $0xc60] sm:$0xff]
    %v481 = vld [vmem:[#allocation5 + $0xc68] sm:$0xff]
    %v482 = vld [vmem:[#allocation5 + $0xc70] sm:$0xff]
    %v483 = vld [vmem:[#allocation5 + $0xc78] sm:$0xff]
    %v484 = vld [vmem:[#allocation5 + $0xc80] sm:$0xff]
    %v485 = vld [vmem:[#allocation5 + $0xc88] sm:$0xff]
    %v486 = vld [vmem:[#allocation5 + $0xc90] sm:$0xff]
    %v487 = vld [vmem:[#allocation5 + $0xc98] sm:$0xff]
    %v488 = vld [vmem:[#allocation5 + $0xca0] sm:$0xff]
    %v489 = vld [vmem:[#allocation5 + $0xca8] sm:$0xff]
    %v490 = vld [vmem:[#allocation5 + $0xcb0] sm:$0xff]
    %v491 = vld [vmem:[#allocation5 + $0xcb8] sm:$0xff]
    %v492 = vld [vmem:[#allocation5 + $0xcc0] sm:$0xff]
    %v493 = vld [vmem:[#allocation5 + $0xcc8] sm:$0xff]
    %v494 = vld [vmem:[#allocation5 + $0xcd0] sm:$0xff]
    %v495 = vld [vmem:[#allocation5 + $0xcd8] sm:$0xff]
    %v496 = vld [vmem:[#allocation5 + $0xce0] sm:$0xff]
    %v497 = vld [vmem:[#allocation5 + $0xce8] sm:$0xff]
    %v498 = vld [vmem:[#allocation5 + $0xcf0] sm:$0xff]
    %v499 = vld [vmem:[#allocation5 + $0xcf8] sm:$0xff]
    %v500 = vld [vmem:[#allocation5 + $0xd00] sm:$0xff]
    %v501 = vld [vmem:[#allocation5 + $0xd08] sm:$0xff]
    %v502 = vld [vmem:[#allocation5 + $0xd10] sm:$0xff]
    %v503 = vld [vmem:[#allocation5 + $0xd18] sm:$0xff]
    %v504 = vld [vmem:[#allocation5 + $0xd20] sm:$0xff]
    %v505 = vld [vmem:[#allocation5 + $0xd28] sm:$0xff]
    %v506 = vld [vmem:[#allocation5 + $0xd30] sm:$0xff]
    %v507 = vld [vmem:[#allocation5 + $0xd38] sm:$0xff]
    %v508 = vld [vmem:[#allocation5 + $0xd40] sm:$0xff]
    %v509 = vld [vmem:[#allocation5 + $0xd48] sm:$0xff]
    %v510 = vld [vmem:[#allocation5 + $0xd50] sm:$0xff]
    %v511 = vld [vmem:[#allocation5 + $0xd58] sm:$0xff]
    %v512 = vld [vmem:[#allocation5 + $0xd60] sm:$0xff]
    %v513 = vld [vmem:[#allocation5 + $0xd68] sm:$0xff]
    %v514 = vld [vmem:[#allocation5 + $0xd70] sm:$0xff]
    %v515 = vld [vmem:[#allocation5 + $0xd78] sm:$0xff]
    %v516 = vld [vmem:[#allocation5 + $0xd80] sm:$0xff]
    %v517 = vld [vmem:[#allocation5 + $0xd88] sm:$0xff]
    %v518 = vld [vmem:[#allocation5 + $0xd90] sm:$0xff]
    %v519 = vld [vmem:[#allocation5 + $0xd98] sm:$0xff]
    %v520 = vld [vmem:[#allocation5 + $0xda0] sm:$0xff]
    %v521 = vld [vmem:[#allocation5 + $0xda8] sm:$0xff]
    %v522 = vld [vmem:[#allocation5 + $0xdb0] sm:$0xff]
    %v523 = vld [vmem:[#allocation5 + $0xdb8] sm:$0xff]
    %v524 = vld [vmem:[#allocation5 + $0xdc0] sm:$0xff]
    %v525 = vld [vmem:[#allocation5 + $0xdc8] sm:$0xff]
    %v526 = vld [vmem:[#allocation5 + $0xdd0] sm:$0xff]
    %v527 = vld [vmem:[#allocation5 + $0xdd8] sm:$0xff]
    %v528 = vld [vmem:[#allocation5 + $0xde0] sm:$0xff]
    %v529 = vld [vmem:[#allocation5 + $0xde8] sm:$0xff]
    %v530 = vld [vmem:[#allocation5 + $0xdf0] sm:$0xff]
    %v531 = vld [vmem:[#allocation5 + $0xdf8] sm:$0xff]
    %v532 = vld [vmem:[#allocation5 + $0xe00] sm:$0xff]
    %v533 = vld [vmem:[#allocation5 + $0xe08] sm:$0xff]
    %v534 = vld [vmem:[#allocation5 + $0xe10] sm:$0xff]
    %v535 = vld [vmem:[#allocation5 + $0xe18] sm:$0xff]
    %v536 = vld [vmem:[#allocation5 + $0xe20] sm:$0xff]
    %v537 = vld [vmem:[#allocation5 + $0xe28] sm:$0xff]
    %v538 = vld [vmem:[#allocation5 + $0xe30] sm:$0xff]
    %v539 = vld [vmem:[#allocation5 + $0xe38] sm:$0xff]
    %v540 = vld [vmem:[#allocation5 + $0xe40] sm:$0xff]
    %v541 = vld [vmem:[#allocation5 + $0xe48] sm:$0xff]
    %v542 = vld [vmem:[#allocation5 + $0xe50] sm:$0xff]
    %v543 = vld [vmem:[#allocation5 + $0xe58] sm:$0xff]
    %v544 = vld [vmem:[#allocation5 + $0xe60] sm:$0xff]
    %v545 = vld [vmem:[#allocation5 + $0xe68] sm:$0xff]
    %v546 = vld [vmem:[#allocation5 + $0xe70] sm:$0xff]
    %v547 = vld [vmem:[#allocation5 + $0xe78] sm:$0xff]
    %v548 = vld [vmem:[#allocation5 + $0xe80] sm:$0xff]
    %v549 = vld [vmem:[#allocation5 + $0xe88] sm:$0xff]
    %v550 = vld [vmem:[#allocation5 + $0xe90] sm:$0xff]
    %v551 = vld [vmem:[#allocation5 + $0xe98] sm:$0xff]
    %v552 = vld [vmem:[#allocation5 + $0xea0] sm:$0xff]
    %v553 = vld [vmem:[#allocation5 + $0xea8] sm:$0xff]
    %v554 = vld [vmem:[#allocation5 + $0xeb0] sm:$0xff]
    %v555 = vld [vmem:[#allocation5 + $0xeb8] sm:$0xff]
    %v556 = vld [vmem:[#allocation5 + $0xec0] sm:$0xff]
    %v557 = vld [vmem:[#allocation5 + $0xec8] sm:$0xff]
    %v558 = vld [vmem:[#allocation5 + $0xed0] sm:$0xff]
    %v559 = vld [vmem:[#allocation5 + $0xed8] sm:$0xff]
    %v560 = vld [vmem:[#allocation5 + $0xee0] sm:$0xff]
    %v561 = vld [vmem:[#allocation5 + $0xee8] sm:$0xff]
    %v562 = vld [vmem:[#allocation5 + $0xef0] sm:$0xff]
    %v563 = vld [vmem:[#allocation5 + $0xef8] sm:$0xff]
    %v564 = vld [vmem:[#allocation5 + $0xf00] sm:$0xff]
    %v565 = vld [vmem:[#allocation5 + $0xf08] sm:$0xff]
    %v566 = vld [vmem:[#allocation5 + $0xf10] sm:$0xff]
    %v567 = vld [vmem:[#allocation5 + $0xf18] sm:$0xff]
    %v568 = vld [vmem:[#allocation5 + $0xf20] sm:$0xff]
    %v569 = vld [vmem:[#allocation5 + $0xf28] sm:$0xff]
    %v570 = vld [vmem:[#allocation5 + $0xf30] sm:$0xff]
    %v571 = vld [vmem:[#allocation5 + $0xf38] sm:$0xff]
    %v572 = vld [vmem:[#allocation5 + $0xf40] sm:$0xff]
    %v573 = vld [vmem:[#allocation5 + $0xf48] sm:$0xff]
    %v574 = vld [vmem:[#allocation5 + $0xf50] sm:$0xff]
    %v575 = vld [vmem:[#allocation5 + $0xf58] sm:$0xff]
    %v576 = vld [vmem:[#allocation5 + $0xf60] sm:$0xff]
    %v577 = vld [vmem:[#allocation5 + $0xf68] sm:$0xff]
    %v578 = vld [vmem:[#allocation5 + $0xf70] sm:$0xff]
    %v579 = vld [vmem:[#allocation5 + $0xf78] sm:$0xff]
    %v580 = vld [vmem:[#allocation5 + $0xf80] sm:$0xff]
    %v581 = vld [vmem:[#allocation5 + $0xf88] sm:$0xff]
    %v582 = vld [vmem:[#allocation5 + $0xf90] sm:$0xff]
    %v583 = vld [vmem:[#allocation5 + $0xf98] sm:$0xff]
    %v584 = vld [vmem:[#allocation5 + $0xfa0] sm:$0xff]
    %v585 = vld [vmem:[#allocation5 + $0xfa8] sm:$0xff]
    %v586 = vld [vmem:[#allocation5 + $0xfb0] sm:$0xff]
    %v587 = vld [vmem:[#allocation5 + $0xfb8] sm:$0xff]
    %v588 = vld [vmem:[#allocation5 + $0xfc0] sm:$0xff]
    %v589 = vld [vmem:[#allocation5 + $0xfc8] sm:$0xff]
    %v590 = vld [vmem:[#allocation5 + $0xfd0] sm:$0xff]
    %v591 = vld [vmem:[#allocation5 + $0xfd8] sm:$0xff]
    %v592 = vld [vmem:[#allocation5 + $0xfe0] sm:$0xff]
    %v593 = vld [vmem:[#allocation5 + $0xfe8] sm:$0xff]
    %v594 = vld [vmem:[#allocation5 + $0xff0] sm:$0xff]
    %v595 = vld [vmem:[#allocation5 + $0xff8] sm:$0xff]
    %v596 = vpack.c.bf16 %v86, %v84
    %v597 = vpack.c.bf16 %v87, %v85
    %v598 = vpack.c.bf16 %v90, %v88
    %v599 = vpack.c.bf16 %v91, %v89
    %v600 = vpack.c.bf16 %v94, %v92
    %v601 = vpack.c.bf16 %v95, %v93
    %v602 = vpack.c.bf16 %v98, %v96
    %v603 = vpack.c.bf16 %v99, %v97
    %v604 = vpack.c.bf16 %v102, %v100
    %v605 = vpack.c.bf16 %v103, %v101
    %v606 = vpack.c.bf16 %v106, %v104
    %v607 = vpack.c.bf16 %v107, %v105
    %v608 = vpack.c.bf16 %v110, %v108
    %v609 = vpack.c.bf16 %v111, %v109
    %v610 = vpack.c.bf16 %v114, %v112
    %v611 = vpack.c.bf16 %v115, %v113
    %v612 = vpack.c.bf16 %v118, %v116
    %v613 = vpack.c.bf16 %v119, %v117
    %v614 = vpack.c.bf16 %v122, %v120
    %v615 = vpack.c.bf16 %v123, %v121
    %v616 = vpack.c.bf16 %v126, %v124
    %v617 = vpack.c.bf16 %v127, %v125
    %v618 = vpack.c.bf16 %v130, %v128
    %v619 = vpack.c.bf16 %v131, %v129
    %v620 = vpack.c.bf16 %v134, %v132
    %v621 = vpack.c.bf16 %v135, %v133
    %v622 = vpack.c.bf16 %v138, %v136
    %v623 = vpack.c.bf16 %v139, %v137
    %v624 = vpack.c.bf16 %v142, %v140
    %v625 = vpack.c.bf16 %v143, %v141
    %v626 = vpack.c.bf16 %v146, %v144
    %v627 = vpack.c.bf16 %v147, %v145
    %v628 = vpack.c.bf16 %v150, %v148
    %v629 = vpack.c.bf16 %v151, %v149
    %v630 = vpack.c.bf16 %v154, %v152
    %v631 = vpack.c.bf16 %v155, %v153
    %v632 = vpack.c.bf16 %v158, %v156
    %v633 = vpack.c.bf16 %v159, %v157
    %v634 = vpack.c.bf16 %v162, %v160
    %v635 = vpack.c.bf16 %v163, %v161
    %v636 = vpack.c.bf16 %v166, %v164
    %v637 = vpack.c.bf16 %v167, %v165
    %v638 = vpack.c.bf16 %v170, %v168
    %v639 = vpack.c.bf16 %v171, %v169
    %v640 = vpack.c.bf16 %v174, %v172
    %v641 = vpack.c.bf16 %v175, %v173
    %v642 = vpack.c.bf16 %v178, %v176
    %v643 = vpack.c.bf16 %v179, %v177
    %v644 = vpack.c.bf16 %v182, %v180
    %v645 = vpack.c.bf16 %v183, %v181
    %v646 = vpack.c.bf16 %v186, %v184
    %v647 = vpack.c.bf16 %v187, %v185
    %v648 = vpack.c.bf16 %v190, %v188
    %v649 = vpack.c.bf16 %v191, %v189
    %v650 = vpack.c.bf16 %v194, %v192
    %v651 = vpack.c.bf16 %v195, %v193
    %v652 = vpack.c.bf16 %v198, %v196
    %v653 = vpack.c.bf16 %v199, %v197
    %v654 = vpack.c.bf16 %v202, %v200
    %v655 = vpack.c.bf16 %v203, %v201
    %v656 = vpack.c.bf16 %v206, %v204
    %v657 = vpack.c.bf16 %v207, %v205
    %v658 = vpack.c.bf16 %v210, %v208
    %v659 = vpack.c.bf16 %v211, %v209
    %v660 = vpack.c.bf16 %v214, %v212
    %v661 = vpack.c.bf16 %v215, %v213
    %v662 = vpack.c.bf16 %v218, %v216
    %v663 = vpack.c.bf16 %v219, %v217
    %v664 = vpack.c.bf16 %v222, %v220
    %v665 = vpack.c.bf16 %v223, %v221
    %v666 = vpack.c.bf16 %v226, %v224
    %v667 = vpack.c.bf16 %v227, %v225
    %v668 = vpack.c.bf16 %v230, %v228
    %v669 = vpack.c.bf16 %v231, %v229
    %v670 = vpack.c.bf16 %v234, %v232
    %v671 = vpack.c.bf16 %v235, %v233
    %v672 = vpack.c.bf16 %v238, %v236
    %v673 = vpack.c.bf16 %v239, %v237
    %v674 = vpack.c.bf16 %v242, %v240
    %v675 = vpack.c.bf16 %v243, %v241
    %v676 = vpack.c.bf16 %v246, %v244
    %v677 = vpack.c.bf16 %v247, %v245
    %v678 = vpack.c.bf16 %v250, %v248
    %v679 = vpack.c.bf16 %v251, %v249
    %v680 = vpack.c.bf16 %v254, %v252
    %v681 = vpack.c.bf16 %v255, %v253
    %v682 = vpack.c.bf16 %v258, %v256
    %v683 = vpack.c.bf16 %v259, %v257
    %v684 = vpack.c.bf16 %v262, %v260
    %v685 = vpack.c.bf16 %v263, %v261
    %v686 = vpack.c.bf16 %v266, %v264
    %v687 = vpack.c.bf16 %v267, %v265
    %v688 = vpack.c.bf16 %v270, %v268
    %v689 = vpack.c.bf16 %v271, %v269
    %v690 = vpack.c.bf16 %v274, %v272
    %v691 = vpack.c.bf16 %v275, %v273
    %v692 = vpack.c.bf16 %v278, %v276
    %v693 = vpack.c.bf16 %v279, %v277
    %v694 = vpack.c.bf16 %v282, %v280
    %v695 = vpack.c.bf16 %v283, %v281
    %v696 = vpack.c.bf16 %v286, %v284
    %v697 = vpack.c.bf16 %v287, %v285
    %v698 = vpack.c.bf16 %v290, %v288
    %v699 = vpack.c.bf16 %v291, %v289
    %v700 = vpack.c.bf16 %v294, %v292
    %v701 = vpack.c.bf16 %v295, %v293
    %v702 = vpack.c.bf16 %v298, %v296
    %v703 = vpack.c.bf16 %v299, %v297
    %v704 = vpack.c.bf16 %v302, %v300
    %v705 = vpack.c.bf16 %v303, %v301
    %v706 = vpack.c.bf16 %v306, %v304
    %v707 = vpack.c.bf16 %v307, %v305
    %v708 = vpack.c.bf16 %v310, %v308
    %v709 = vpack.c.bf16 %v311, %v309
    %v710 = vpack.c.bf16 %v314, %v312
    %v711 = vpack.c.bf16 %v315, %v313
    %v712 = vpack.c.bf16 %v318, %v316
    %v713 = vpack.c.bf16 %v319, %v317
    %v714 = vpack.c.bf16 %v322, %v320
    %v715 = vpack.c.bf16 %v323, %v321
    %v716 = vpack.c.bf16 %v326, %v324
    %v717 = vpack.c.bf16 %v327, %v325
    %v718 = vpack.c.bf16 %v330, %v328
    %v719 = vpack.c.bf16 %v331, %v329
    %v720 = vpack.c.bf16 %v334, %v332
    %v721 = vpack.c.bf16 %v335, %v333
    %v722 = vpack.c.bf16 %v338, %v336
    %v723 = vpack.c.bf16 %v339, %v337
    %v724 = vpack.c.bf16 %v342, %v340
    %v725 = vpack.c.bf16 %v343, %v341
    %v726 = vpack.c.bf16 %v346, %v344
    %v727 = vpack.c.bf16 %v347, %v345
    %v728 = vpack.c.bf16 %v350, %v348
    %v729 = vpack.c.bf16 %v351, %v349
    %v730 = vpack.c.bf16 %v354, %v352
    %v731 = vpack.c.bf16 %v355, %v353
    %v732 = vpack.c.bf16 %v358, %v356
    %v733 = vpack.c.bf16 %v359, %v357
    %v734 = vpack.c.bf16 %v362, %v360
    %v735 = vpack.c.bf16 %v363, %v361
    %v736 = vpack.c.bf16 %v366, %v364
    %v737 = vpack.c.bf16 %v367, %v365
    %v738 = vpack.c.bf16 %v370, %v368
    %v739 = vpack.c.bf16 %v371, %v369
    %v740 = vpack.c.bf16 %v374, %v372
    %v741 = vpack.c.bf16 %v375, %v373
    %v742 = vpack.c.bf16 %v378, %v376
    %v743 = vpack.c.bf16 %v379, %v377
    %v744 = vpack.c.bf16 %v382, %v380
    %v745 = vpack.c.bf16 %v383, %v381
    %v746 = vpack.c.bf16 %v386, %v384
    %v747 = vpack.c.bf16 %v387, %v385
    %v748 = vpack.c.bf16 %v390, %v388
    %v749 = vpack.c.bf16 %v391, %v389
    %v750 = vpack.c.bf16 %v394, %v392
    %v751 = vpack.c.bf16 %v395, %v393
    %v752 = vpack.c.bf16 %v398, %v396
    %v753 = vpack.c.bf16 %v399, %v397
    %v754 = vpack.c.bf16 %v402, %v400
    %v755 = vpack.c.bf16 %v403, %v401
    %v756 = vpack.c.bf16 %v406, %v404
    %v757 = vpack.c.bf16 %v407, %v405
    %v758 = vpack.c.bf16 %v410, %v408
    %v759 = vpack.c.bf16 %v411, %v409
    %v760 = vpack.c.bf16 %v414, %v412
    %v761 = vpack.c.bf16 %v415, %v413
    %v762 = vpack.c.bf16 %v418, %v416
    %v763 = vpack.c.bf16 %v419, %v417
    %v764 = vpack.c.bf16 %v422, %v420
    %v765 = vpack.c.bf16 %v423, %v421
    %v766 = vpack.c.bf16 %v426, %v424
    %v767 = vpack.c.bf16 %v427, %v425
    %v768 = vpack.c.bf16 %v430, %v428
    %v769 = vpack.c.bf16 %v431, %v429
    %v770 = vpack.c.bf16 %v434, %v432
    %v771 = vpack.c.bf16 %v435, %v433
    %v772 = vpack.c.bf16 %v438, %v436
    %v773 = vpack.c.bf16 %v439, %v437
    %v774 = vpack.c.bf16 %v442, %v440
    %v775 = vpack.c.bf16 %v443, %v441
    %v776 = vpack.c.bf16 %v446, %v444
    %v777 = vpack.c.bf16 %v447, %v445
    %v778 = vpack.c.bf16 %v450, %v448
    %v779 = vpack.c.bf16 %v451, %v449
    %v780 = vpack.c.bf16 %v454, %v452
    %v781 = vpack.c.bf16 %v455, %v453
    %v782 = vpack.c.bf16 %v458, %v456
    %v783 = vpack.c.bf16 %v459, %v457
    %v784 = vpack.c.bf16 %v462, %v460
    %v785 = vpack.c.bf16 %v463, %v461
    %v786 = vpack.c.bf16 %v466, %v464
    %v787 = vpack.c.bf16 %v467, %v465
    %v788 = vpack.c.bf16 %v470, %v468
    %v789 = vpack.c.bf16 %v471, %v469
    %v790 = vpack.c.bf16 %v474, %v472
    %v791 = vpack.c.bf16 %v475, %v473
    %v792 = vpack.c.bf16 %v478, %v476
    %v793 = vpack.c.bf16 %v479, %v477
    %v794 = vpack.c.bf16 %v482, %v480
    %v795 = vpack.c.bf16 %v483, %v481
    %v796 = vpack.c.bf16 %v486, %v484
    %v797 = vpack.c.bf16 %v487, %v485
    %v798 = vpack.c.bf16 %v490, %v488
    %v799 = vpack.c.bf16 %v491, %v489
    %v800 = vpack.c.bf16 %v494, %v492
    %v801 = vpack.c.bf16 %v495, %v493
    %v802 = vpack.c.bf16 %v498, %v496
    %v803 = vpack.c.bf16 %v499, %v497
    %v804 = vpack.c.bf16 %v502, %v500
    %v805 = vpack.c.bf16 %v503, %v501
    %v806 = vpack.c.bf16 %v506, %v504
    %v807 = vpack.c.bf16 %v507, %v505
    %v808 = vpack.c.bf16 %v510, %v508
    %v809 = vpack.c.bf16 %v511, %v509
    %v810 = vpack.c.bf16 %v514, %v512
    %v811 = vpack.c.bf16 %v515, %v513
    %v812 = vpack.c.bf16 %v518, %v516
    %v813 = vpack.c.bf16 %v519, %v517
    %v814 = vpack.c.bf16 %v522, %v520
    %v815 = vpack.c.bf16 %v523, %v521
    %v816 = vpack.c.bf16 %v526, %v524
    %v817 = vpack.c.bf16 %v527, %v525
    %v818 = vpack.c.bf16 %v530, %v528
    %v819 = vpack.c.bf16 %v531, %v529
    %v820 = vpack.c.bf16 %v534, %v532
    %v821 = vpack.c.bf16 %v535, %v533
    %v822 = vpack.c.bf16 %v538, %v536
    %v823 = vpack.c.bf16 %v539, %v537
    %v824 = vpack.c.bf16 %v542, %v540
    %v825 = vpack.c.bf16 %v543, %v541
    %v826 = vpack.c.bf16 %v546, %v544
    %v827 = vpack.c.bf16 %v547, %v545
    %v828 = vpack.c.bf16 %v550, %v548
    %v829 = vpack.c.bf16 %v551, %v549
    %v830 = vpack.c.bf16 %v554, %v552
    %v831 = vpack.c.bf16 %v555, %v553
    %v832 = vpack.c.bf16 %v558, %v556
    %v833 = vpack.c.bf16 %v559, %v557
    %v834 = vpack.c.bf16 %v562, %v560
    %v835 = vpack.c.bf16 %v563, %v561
    %v836 = vpack.c.bf16 %v566, %v564
    %v837 = vpack.c.bf16 %v567, %v565
    %v838 = vpack.c.bf16 %v570, %v568
    %v839 = vpack.c.bf16 %v571, %v569
    %v840 = vpack.c.bf16 %v574, %v572
    %v841 = vpack.c.bf16 %v575, %v573
    %v842 = vpack.c.bf16 %v578, %v576
    %v843 = vpack.c.bf16 %v579, %v577
    %v844 = vpack.c.bf16 %v582, %v580
    %v845 = vpack.c.bf16 %v583, %v581
    %v846 = vpack.c.bf16 %v586, %v584
    %v847 = vpack.c.bf16 %v587, %v585
    %v848 = vpack.c.bf16 %v590, %v588
    %v849 = vpack.c.bf16 %v591, %v589
    %v850 = vpack.c.bf16 %v594, %v592
    %v851 = vpack.c.bf16 %v595, %v593
    %v852 = vld [vmem:[#allocation7] sm:$0x3]
    %v854 = vlaneseq
    %v855 = vshrl.u32 %v854, 7
    %v856 = vsub.s32 0, %v855
    %v857 = vrot.slane %v852, %v856
    %v858 = vlaneseq
    %v859 = vshrl.u32 %v858, 7
    %v860 = vsub.s32 1, %v859
    %v861 = vrot.slane %v852, %v860
    %864 = vmatprep.subr.bf16.mxu0 %v597
    %865 = vmatpush1.bf16.msra.mxu0 %v596
    %866 = vmatprep.subr.bf16.mxu0 %v599
    %867 = vmatpush1.bf16.msra.mxu0 %v598
    %868 = vmatprep.subr.bf16.mxu0 %v601
    %869 = vmatpush1.bf16.msra.mxu0 %v600
    %870 = vmatprep.subr.bf16.mxu0 %v603
    %871 = vmatpush1.bf16.msra.mxu0 %v602
    %872 = vmatprep.subr.bf16.mxu0 %v605
    %873 = vmatpush1.bf16.msra.mxu0 %v604
    %874 = vmatprep.subr.bf16.mxu0 %v607
    %875 = vmatpush1.bf16.msra.mxu0 %v606
    %876 = vmatprep.subr.bf16.mxu0 %v609
    %877 = vmatpush1.bf16.msra.mxu0 %v608
    %878 = vmatprep.subr.bf16.mxu0 %v611
    %879 = vmatpush1.bf16.msra.mxu0 %v610
    %880 = vmatprep.subr.bf16.mxu0 %v613
    %881 = vmatpush1.bf16.msra.mxu0 %v612
    %882 = vmatprep.subr.bf16.mxu0 %v615
    %883 = vmatpush1.bf16.msra.mxu0 %v614
    %884 = vmatprep.subr.bf16.mxu0 %v617
    %885 = vmatpush1.bf16.msra.mxu0 %v616
    %886 = vmatprep.subr.bf16.mxu0 %v619
    %887 = vmatpush1.bf16.msra.mxu0 %v618
    %888 = vmatprep.subr.bf16.mxu0 %v621
    %889 = vmatpush1.bf16.msra.mxu0 %v620
    %890 = vmatprep.subr.bf16.mxu0 %v623
    %891 = vmatpush1.bf16.msra.mxu0 %v622
    %892 = vmatprep.subr.bf16.mxu0 %v625
    %893 = vmatpush1.bf16.msra.mxu0 %v624
    %894 = vmatprep.subr.bf16.mxu0 %v627
    %895 = vmatpush1.bf16.msra.mxu0 %v626
    %896 = vmatprep.mubr.bf16.mxu0 %v69
    %897 = vmatmul.mubr.bf16.gmra.mrb[0].mxu0 %v68
    %v898 = vpop.f32.mrb[0].mxu0
    %v899 = vadd.f32 %v857, %v898
    %v900 = vpop.f32.mrb[0].mxu0
    %v901 = vadd.f32 %v861, %v900
    %v902 = vpop.f32.mrb[0].mxu0
    %v903 = vpop.f32.mrb[0].mxu0
    %904 = vdwg.mxu0
    %905 = vmatprep.subr.bf16.mxu0 %v629
    %906 = vmatpush1.bf16.msra.mxu0 %v628
    %907 = vmatprep.subr.bf16.mxu0 %v631
    %908 = vmatpush1.bf16.msra.mxu0 %v630
    %909 = vmatprep.subr.bf16.mxu0 %v633
    %910 = vmatpush1.bf16.msra.mxu0 %v632
    %911 = vmatprep.subr.bf16.mxu0 %v635
    %912 = vmatpush1.bf16.msra.mxu0 %v634
    %913 = vmatprep.subr.bf16.mxu0 %v637
    %914 = vmatpush1.bf16.msra.mxu0 %v636
    %915 = vmatprep.subr.bf16.mxu0 %v639
    %916 = vmatpush1.bf16.msra.mxu0 %v638
    %917 = vmatprep.subr.bf16.mxu0 %v641
    %918 = vmatpush1.bf16.msra.mxu0 %v640
    %919 = vmatprep.subr.bf16.mxu0 %v643
    %920 = vmatpush1.bf16.msra.mxu0 %v642
    %921 = vmatprep.subr.bf16.mxu0 %v645
    %922 = vmatpush1.bf16.msra.mxu0 %v644
    %923 = vmatprep.subr.bf16.mxu0 %v647
    %924 = vmatpush1.bf16.msra.mxu0 %v646
    %925 = vmatprep.subr.bf16.mxu0 %v649
    %926 = vmatpush1.bf16.msra.mxu0 %v648
    %927 = vmatprep.subr.bf16.mxu0 %v651
    %928 = vmatpush1.bf16.msra.mxu0 %v650
    %929 = vmatprep.subr.bf16.mxu0 %v653
    %930 = vmatpush1.bf16.msra.mxu0 %v652
    %931 = vmatprep.subr.bf16.mxu0 %v655
    %932 = vmatpush1.bf16.msra.mxu0 %v654
    %933 = vmatprep.subr.bf16.mxu0 %v657
    %934 = vmatpush1.bf16.msra.mxu0 %v656
    %935 = vmatprep.subr.bf16.mxu0 %v659
    %936 = vmatpush1.bf16.msra.mxu0 %v658
    %937 = vmatprep.mubr.bf16.mxu0 %v71
    %938 = vmatmul.mubr.bf16.gmra.mrb[0].mxu0 %v70
    %v939 = vpop.f32.mrb[0].mxu0
    %v940 = vadd.f32 %v899, %v939
    %v941 = vpop.f32.mrb[0].mxu0
    %v942 = vadd.f32 %v901, %v941
    %v943 = vpop.f32.mrb[0].mxu0
    %v944 = vpop.f32.mrb[0].mxu0
    %945 = vdwg.mxu0
    %946 = vmatprep.subr.bf16.mxu0 %v661
    %947 = vmatpush1.bf16.msra.mxu0 %v660
    %948 = vmatprep.subr.bf16.mxu0 %v663
    %949 = vmatpush1.bf16.msra.mxu0 %v662
    %950 = vmatprep.subr.bf16.mxu0 %v665
    %951 = vmatpush1.bf16.msra.mxu0 %v664
    %952 = vmatprep.subr.bf16.mxu0 %v667
    %953 = vmatpush1.bf16.msra.mxu0 %v666
    %954 = vmatprep.subr.bf16.mxu0 %v669
    %955 = vmatpush1.bf16.msra.mxu0 %v668
    %956 = vmatprep.subr.bf16.mxu0 %v671
    %957 = vmatpush1.bf16.msra.mxu0 %v670
    %958 = vmatprep.subr.bf16.mxu0 %v673
    %959 = vmatpush1.bf16.msra.mxu0 %v672
    %960 = vmatprep.subr.bf16.mxu0 %v675
    %961 = vmatpush1.bf16.msra.mxu0 %v674
    %962 = vmatprep.subr.bf16.mxu0 %v677
    %963 = vmatpush1.bf16.msra.mxu0 %v676
    %964 = vmatprep.subr.bf16.mxu0 %v679
    %965 = vmatpush1.bf16.msra.mxu0 %v678
    %966 = vmatprep.subr.bf16.mxu0 %v681
    %967 = vmatpush1.bf16.msra.mxu0 %v680
    %968 = vmatprep.subr.bf16.mxu0 %v683
    %969 = vmatpush1.bf16.msra.mxu0 %v682
    %970 = vmatprep.subr.bf16.mxu0 %v685
    %971 = vmatpush1.bf16.msra.mxu0 %v684
    %972 = vmatprep.subr.bf16.mxu0 %v687
    %973 = vmatpush1.bf16.msra.mxu0 %v686
    %974 = vmatprep.subr.bf16.mxu0 %v689
    %975 = vmatpush1.bf16.msra.mxu0 %v688
    %976 = vmatprep.subr.bf16.mxu0 %v691
    %977 = vmatpush1.bf16.msra.mxu0 %v690
    %978 = vmatprep.mubr.bf16.mxu0 %v73
    %979 = vmatmul.mubr.bf16.gmra.mrb[0].mxu0 %v72
    %v980 = vpop.f32.mrb[0].mxu0
    %v981 = vadd.f32 %v940, %v980
    %v982 = vpop.f32.mrb[0].mxu0
    %v983 = vadd.f32 %v942, %v982
    %v984 = vpop.f32.mrb[0].mxu0
    %v985 = vpop.f32.mrb[0].mxu0
    %986 = vdwg.mxu0
    %987 = vmatprep.subr.bf16.mxu0 %v693
    %988 = vmatpush1.bf16.msra.mxu0 %v692
    %989 = vmatprep.subr.bf16.mxu0 %v695
    %990 = vmatpush1.bf16.msra.mxu0 %v694
    %991 = vmatprep.subr.bf16.mxu0 %v697
    %992 = vmatpush1.bf16.msra.mxu0 %v696
    %993 = vmatprep.subr.bf16.mxu0 %v699
    %994 = vmatpush1.bf16.msra.mxu0 %v698
    %995 = vmatprep.subr.bf16.mxu0 %v701
    %996 = vmatpush1.bf16.msra.mxu0 %v700
    %997 = vmatprep.subr.bf16.mxu0 %v703
    %998 = vmatpush1.bf16.msra.mxu0 %v702
    %999 = vmatprep.subr.bf16.mxu0 %v705
    %1000 = vmatpush1.bf16.msra.mxu0 %v704
    %1001 = vmatprep.subr.bf16.mxu0 %v707
    %1002 = vmatpush1.bf16.msra.mxu0 %v706
    %1003 = vmatprep.subr.bf16.mxu0 %v709
    %1004 = vmatpush1.bf16.msra.mxu0 %v708
    %1005 = vmatprep.subr.bf16.mxu0 %v711
    %1006 = vmatpush1.bf16.msra.mxu0 %v710
    %1007 = vmatprep.subr.bf16.mxu0 %v713
    %1008 = vmatpush1.bf16.msra.mxu0 %v712
    %1009 = vmatprep.subr.bf16.mxu0 %v715
    %1010 = vmatpush1.bf16.msra.mxu0 %v714
    %1011 = vmatprep.subr.bf16.mxu0 %v717
    %1012 = vmatpush1.bf16.msra.mxu0 %v716
    %1013 = vmatprep.subr.bf16.mxu0 %v719
    %1014 = vmatpush1.bf16.msra.mxu0 %v718
    %1015 = vmatprep.subr.bf16.mxu0 %v721
    %1016 = vmatpush1.bf16.msra.mxu0 %v720
    %1017 = vmatprep.subr.bf16.mxu0 %v723
    %1018 = vmatpush1.bf16.msra.mxu0 %v722
    %1019 = vmatprep.mubr.bf16.mxu0 %v75
    %1020 = vmatmul.mubr.bf16.gmra.mrb[0].mxu0 %v74
    %v1021 = vpop.f32.mrb[0].mxu0
    %v1022 = vadd.f32 %v981, %v1021
    %v1023 = vpop.f32.mrb[0].mxu0
    %v1024 = vadd.f32 %v983, %v1023
    %v1025 = vpop.f32.mrb[0].mxu0
    %v1026 = vpop.f32.mrb[0].mxu0
    %1027 = vdwg.mxu0
    %1028 = vmatprep.subr.bf16.mxu0 %v725
    %1029 = vmatpush1.bf16.msra.mxu0 %v724
    %1030 = vmatprep.subr.bf16.mxu0 %v727
    %1031 = vmatpush1.bf16.msra.mxu0 %v726
    %1032 = vmatprep.subr.bf16.mxu0 %v729
    %1033 = vmatpush1.bf16.msra.mxu0 %v728
    %1034 = vmatprep.subr.bf16.mxu0 %v731
    %1035 = vmatpush1.bf16.msra.mxu0 %v730
    %1036 = vmatprep.subr.bf16.mxu0 %v733
    %1037 = vmatpush1.bf16.msra.mxu0 %v732
    %1038 = vmatprep.subr.bf16.mxu0 %v735
    %1039 = vmatpush1.bf16.msra.mxu0 %v734
    %1040 = vmatprep.subr.bf16.mxu0 %v737
    %1041 = vmatpush1.bf16.msra.mxu0 %v736
    %1042 = vmatprep.subr.bf16.mxu0 %v739
    %1043 = vmatpush1.bf16.msra.mxu0 %v738
    %1044 = vmatprep.subr.bf16.mxu0 %v741
    %1045 = vmatpush1.bf16.msra.mxu0 %v740
    %1046 = vmatprep.subr.bf16.mxu0 %v743
    %1047 = vmatpush1.bf16.msra.mxu0 %v742
    %1048 = vmatprep.subr.bf16.mxu0 %v745
    %1049 = vmatpush1.bf16.msra.mxu0 %v744
    %1050 = vmatprep.subr.bf16.mxu0 %v747
    %1051 = vmatpush1.bf16.msra.mxu0 %v746
    %1052 = vmatprep.subr.bf16.mxu0 %v749
    %1053 = vmatpush1.bf16.msra.mxu0 %v748
    %1054 = vmatprep.subr.bf16.mxu0 %v751
    %1055 = vmatpush1.bf16.msra.mxu0 %v750
    %1056 = vmatprep.subr.bf16.mxu0 %v753
    %1057 = vmatpush1.bf16.msra.mxu0 %v752
    %1058 = vmatprep.subr.bf16.mxu0 %v755
    %1059 = vmatpush1.bf16.msra.mxu0 %v754
    %1060 = vmatprep.mubr.bf16.mxu0 %v77
    %1061 = vmatmul.mubr.bf16.gmra.mrb[0].mxu0 %v76
    %v1062 = vpop.f32.mrb[0].mxu0
    %v1063 = vadd.f32 %v1022, %v1062
    %v1064 = vpop.f32.mrb[0].mxu0
    %v1065 = vadd.f32 %v1024, %v1064
    %v1066 = vpop.f32.mrb[0].mxu0
    %v1067 = vpop.f32.mrb[0].mxu0
    %1068 = vdwg.mxu0
    %1069 = vmatprep.subr.bf16.mxu0 %v757
    %1070 = vmatpush1.bf16.msra.mxu0 %v756
    %1071 = vmatprep.subr.bf16.mxu0 %v759
    %1072 = vmatpush1.bf16.msra.mxu0 %v758
    %1073 = vmatprep.subr.bf16.mxu0 %v761
    %1074 = vmatpush1.bf16.msra.mxu0 %v760
    %1075 = vmatprep.subr.bf16.mxu0 %v763
    %1076 = vmatpush1.bf16.msra.mxu0 %v762
    %1077 = vmatprep.subr.bf16.mxu0 %v765
    %1078 = vmatpush1.bf16.msra.mxu0 %v764
    %1079 = vmatprep.subr.bf16.mxu0 %v767
    %1080 = vmatpush1.bf16.msra.mxu0 %v766
    %1081 = vmatprep.subr.bf16.mxu0 %v769
    %1082 = vmatpush1.bf16.msra.mxu0 %v768
    %1083 = vmatprep.subr.bf16.mxu0 %v771
    %1084 = vmatpush1.bf16.msra.mxu0 %v770
    %1085 = vmatprep.subr.bf16.mxu0 %v773
    %1086 = vmatpush1.bf16.msra.mxu0 %v772
    %1087 = vmatprep.subr.bf16.mxu0 %v775
    %1088 = vmatpush1.bf16.msra.mxu0 %v774
    %1089 = vmatprep.subr.bf16.mxu0 %v777
    %1090 = vmatpush1.bf16.msra.mxu0 %v776
    %1091 = vmatprep.subr.bf16.mxu0 %v779
    %1092 = vmatpush1.bf16.msra.mxu0 %v778
    %1093 = vmatprep.subr.bf16.mxu0 %v781
    %1094 = vmatpush1.bf16.msra.mxu0 %v780
    %1095 = vmatprep.subr.bf16.mxu0 %v783
    %1096 = vmatpush1.bf16.msra.mxu0 %v782
    %1097 = vmatprep.subr.bf16.mxu0 %v785
    %1098 = vmatpush1.bf16.msra.mxu0 %v784
    %1099 = vmatprep.subr.bf16.mxu0 %v787
    %1100 = vmatpush1.bf16.msra.mxu0 %v786
    %1101 = vmatprep.mubr.bf16.mxu0 %v79
    %1102 = vmatmul.mubr.bf16.gmra.mrb[0].mxu0 %v78
    %v1103 = vpop.f32.mrb[0].mxu0
    %v1104 = vadd.f32 %v1063, %v1103
    %v1105 = vpop.f32.mrb[0].mxu0
    %v1106 = vadd.f32 %v1065, %v1105
    %v1107 = vpop.f32.mrb[0].mxu0
    %v1108 = vpop.f32.mrb[0].mxu0
    %1109 = vdwg.mxu0
    %1110 = vmatprep.subr.bf16.mxu0 %v789
    %1111 = vmatpush1.bf16.msra.mxu0 %v788
    %1112 = vmatprep.subr.bf16.mxu0 %v791
    %1113 = vmatpush1.bf16.msra.mxu0 %v790
    %1114 = vmatprep.subr.bf16.mxu0 %v793
    %1115 = vmatpush1.bf16.msra.mxu0 %v792
    %1116 = vmatprep.subr.bf16.mxu0 %v795
    %1117 = vmatpush1.bf16.msra.mxu0 %v794
    %1118 = vmatprep.subr.bf16.mxu0 %v797
    %1119 = vmatpush1.bf16.msra.mxu0 %v796
    %1120 = vmatprep.subr.bf16.mxu0 %v799
    %1121 = vmatpush1.bf16.msra.mxu0 %v798
    %1122 = vmatprep.subr.bf16.mxu0 %v801
    %1123 = vmatpush1.bf16.msra.mxu0 %v800
    %1124 = vmatprep.subr.bf16.mxu0 %v803
    %1125 = vmatpush1.bf16.msra.mxu0 %v802
    %1126 = vmatprep.subr.bf16.mxu0 %v805
    %1127 = vmatpush1.bf16.msra.mxu0 %v804
    %1128 = vmatprep.subr.bf16.mxu0 %v807
    %1129 = vmatpush1.bf16.msra.mxu0 %v806
    %1130 = vmatprep.subr.bf16.mxu0 %v809
    %1131 = vmatpush1.bf16.msra.mxu0 %v808
    %1132 = vmatprep.subr.bf16.mxu0 %v811
    %1133 = vmatpush1.bf16.msra.mxu0 %v810
    %1134 = vmatprep.subr.bf16.mxu0 %v813
    %1135 = vmatpush1.bf16.msra.mxu0 %v812
    %1136 = vmatprep.subr.bf16.mxu0 %v815
    %1137 = vmatpush1.bf16.msra.mxu0 %v814
    %1138 = vmatprep.subr.bf16.mxu0 %v817
    %1139 = vmatpush1.bf16.msra.mxu0 %v816
    %1140 = vmatprep.subr.bf16.mxu0 %v819
    %1141 = vmatpush1.bf16.msra.mxu0 %v818
    %1142 = vmatprep.mubr.bf16.mxu0 %v81
    %1143 = vmatmul.mubr.bf16.gmra.mrb[0].mxu0 %v80
    %v1144 = vpop.f32.mrb[0].mxu0
    %v1145 = vadd.f32 %v1104, %v1144
    %v1146 = vpop.f32.mrb[0].mxu0
    %v1147 = vadd.f32 %v1106, %v1146
    %v1148 = vpop.f32.mrb[0].mxu0
    %v1149 = vpop.f32.mrb[0].mxu0
    %1150 = vdwg.mxu0
    %1151 = vmatprep.subr.bf16.mxu0 %v821
    %1152 = vmatpush1.bf16.msra.mxu0 %v820
    %1153 = vmatprep.subr.bf16.mxu0 %v823
    %1154 = vmatpush1.bf16.msra.mxu0 %v822
    %1155 = vmatprep.subr.bf16.mxu0 %v825
    %1156 = vmatpush1.bf16.msra.mxu0 %v824
    %1157 = vmatprep.subr.bf16.mxu0 %v827
    %1158 = vmatpush1.bf16.msra.mxu0 %v826
    %1159 = vmatprep.subr.bf16.mxu0 %v829
    %1160 = vmatpush1.bf16.msra.mxu0 %v828
    %1161 = vmatprep.subr.bf16.mxu0 %v831
    %1162 = vmatpush1.bf16.msra.mxu0 %v830
    %1163 = vmatprep.subr.bf16.mxu0 %v833
    %1164 = vmatpush1.bf16.msra.mxu0 %v832
    %1165 = vmatprep.subr.bf16.mxu0 %v835
    %1166 = vmatpush1.bf16.msra.mxu0 %v834
    %1167 = vmatprep.subr.bf16.mxu0 %v837
    %1168 = vmatpush1.bf16.msra.mxu0 %v836
    %1169 = vmatprep.subr.bf16.mxu0 %v839
    %1170 = vmatpush1.bf16.msra.mxu0 %v838
    %1171 = vmatprep.subr.bf16.mxu0 %v841
    %1172 = vmatpush1.bf16.msra.mxu0 %v840
    %1173 = vmatprep.subr.bf16.mxu0 %v843
    %1174 = vmatpush1.bf16.msra.mxu0 %v842
    %1175 = vmatprep.subr.bf16.mxu0 %v845
    %1176 = vmatpush1.bf16.msra.mxu0 %v844
    %1177 = vmatprep.subr.bf16.mxu0 %v847
    %1178 = vmatpush1.bf16.msra.mxu0 %v846
    %1179 = vmatprep.subr.bf16.mxu0 %v849
    %1180 = vmatpush1.bf16.msra.mxu0 %v848
    %1181 = vmatprep.subr.bf16.mxu0 %v851
    %1182 = vmatpush1.bf16.msra.mxu0 %v850
    %1183 = vmatprep.mubr.bf16.mxu0 %v83
    %1184 = vmatmul.mubr.bf16.gmra.mrb[0].mxu0 %v82
    %v1185 = vpop.f32.mrb[0].mxu0
    %v1186 = vadd.f32 %v1145, %v1185
    %v1187 = vpop.f32.mrb[0].mxu0
    %v1188 = vadd.f32 %v1147, %v1187
    %v1189 = vpop.f32.mrb[0].mxu0
    %v1190 = vpop.f32.mrb[0].mxu0
    %1191 = vdwg.mxu0
    %v1192 = vmax.f32 %v1186, 0.0
    %v1193 = vmax.f32 %v1188, 0.0
    %1194 = vst [vmem:[#allocation8] sm:$0xff] %v1192
    %1195 = vst [vmem:[#allocation8 + $0x8] sm:$0xff] %v1193
    // Predicated region
    $region26: #{tpu_custom_call.1} parent=1 // pred_check
      _
    $region27: #{tpu_custom_call.1} parent=1 // pred_check_branch
      %1197 = sbr.rel (0) target = $region29
    $region28: #{tpu_custom_call.1} parent=1 // pred_region
      %s1199 = ssub.s32 256, 256
      %1200 = vsyncadd [#allocation4], %s1199
      %s1202 = sshll.u32 [#allocation8], 4
      %s1203 = int_to_ptr.vmem [resolvable:$true] %s1202
      %1205 = dma.vmem_to_hbm [thread:$0]  %s1203, 256, %s3, [#allocation4]
    $region29: #{tpu_custom_call.1} parent=1 // pred_fallthru
      _
    // Predicated region
    $region30: #{tpu_custom_call.1} parent=1 // pred_check
      _
    $region31: #{tpu_custom_call.1} parent=1 // pred_check_branch
      %1207 = sbr.rel (0) target = $region33
    $region32: #{tpu_custom_call.1} parent=1 // pred_region
      %1208 = dma.done [#allocation4], 256
    $region33: #{tpu_custom_call.1} parent=1 // pred_fallthru
      _
    %1209 = vsyncpa [#allocation3], 1
    %1210 = vsyncpa [#allocation6], 1
    %1211 = vsyncpa [#allocation4], 1

</llo_original>
